<compile_context>
chip_gen: v5e
topology: v5e:2x2
jax: 0.10.0
libtpu: 0.0.40
codegen_flags: <defaults>
</compile_context>

<pallas_src>
import functools
import math

import jax
import jax.numpy as jnp
from jax import lax
from jax.experimental import pallas as pl
from jax.experimental.pallas import tpu as pltpu


def _pick_tile(m, preferred=(512, 256, 128, 64, 32, 16, 8)):
    """Largest preferred tile that evenly divides m (fallback: whole extent)."""
    for t in preferred:
        if t <= m and m % t == 0:
            return t
    return m


# ---------------------------------------------------------------------------
# Pallas kernels
# ---------------------------------------------------------------------------
def _linear_kernel(x_ref, w_ref, b_ref, o_ref):
    """(TM, C) @ (C, O) + (1, O) -> (TM, O); f32 accumulation on the MXU.

    Weights arrive pre-transposed to (C, O) so no in-kernel transpose is
    materialized; the bias is added to the f32 accumulator.
    """
    acc = jnp.dot(x_ref[...], w_ref[...], preferred_element_type=jnp.float32)
    o_ref[...] = (acc + b_ref[...]).astype(o_ref.dtype)


def _mha_kernel(q_ref, k_ref, v_ref, o_ref, *, num_heads, dim):
    """One (batch, q-tile) step: all heads, single lane-dense output store.

    q_ref: (TQ, H*dim); k_ref/v_ref: (NK, H*dim).  Channels are head-contiguous
    (c = h*dim + d) and q already carries the 1/sqrt(dim) scale (both folded
    into the projection weights by the wrapper).
    """
    q = q_ref[...]
    k = k_ref[...]
    v = v_ref[...]
    outs = []
    for h in range(num_heads):  # static unroll; heads share the resident K/V tile
        lo, hi = h * dim, (h + 1) * dim
        qh, kh, vh = q[:, lo:hi], k[:, lo:hi], v[:, lo:hi]
        # scores: contract the feature dim of q and k directly on the MXU
        # (no explicit in-kernel transpose of K is materialized).
        s = lax.dot_general(qh, kh, (((1,), (1,)), ((), ())),
                            preferred_element_type=jnp.float32)       # (TQ, NK)
        m = jnp.max(s, axis=-1, keepdims=True)
        e = jnp.exp(s - m)                                            # f32 softmax
        # One reciprocal per row, then multiplies (approx=True would route the
        # reciprocal to the otherwise-idle EUP for extra headroom).
        r = pl.reciprocal(jnp.sum(e, axis=-1, keepdims=True), approx=False)
        p = (e * r).astype(vh.dtype)
        outs.append(jnp.dot(p, vh, preferred_element_type=jnp.float32))
    # Single lane-dense (TQ, H*dim) store instead of per-head masked stores.
    o_ref[...] = jnp.concatenate(outs, axis=-1).astype(o_ref.dtype)


# ---------------------------------------------------------------------------
# Wrappers
# ---------------------------------------------------------------------------
def _linear(x2d, w_t, b, out_dtype):
    """Tiled 1x1-Conv / linear: x2d (M, C) @ w_t (C, O) + b -> (M, O)."""
    M, C = x2d.shape
    O = w_t.shape[1]
    TM = _pick_tile(M)  # ~512-row tiles at realistic sizes; keeps VMEM bounded
    return pl.pallas_call(
        _linear_kernel,
        out_shape=jax.ShapeDtypeStruct((M, O), out_dtype),
        grid=(M // TM,),
        in_specs=[
            pl.BlockSpec((TM, C), lambda i: (i, 0)),   # pipelined row tiles
            pl.BlockSpec((C, O), lambda i: (0, 0)),    # weights stay resident
            pl.BlockSpec((1, O), lambda i: (0, 0)),    # bias stays resident
        ],
        out_specs=pl.BlockSpec((TM, O), lambda i: (i, 0)),
        compiler_params=pltpu.CompilerParams(
            dimension_semantics=("parallel",)),        # megacore sharding on v7x
    )(x2d, w_t, b.reshape(1, O))


def _attention(q, k, v, num_heads):
    """q/k/v: (B, N, d_model), head-contiguous channels-last -> same layout."""
    B, N, D = q.shape
    dim = D // num_heads
    TQ = _pick_tile(N)
    kern = functools.partial(_mha_kernel, num_heads=num_heads, dim=dim)
    q_spec = pl.BlockSpec((None, TQ, D), lambda b, qi: (b, qi, 0))
    kv_spec = pl.BlockSpec((None, N, D), lambda b, qi: (b, 0, 0))
    return pl.pallas_call(
        kern,
        out_shape=jax.ShapeDtypeStruct((B, N, D), q.dtype),
        grid=(B, N // TQ),
        in_specs=[q_spec, kv_spec, kv_spec],
        out_specs=q_spec,
        compiler_params=pltpu.CompilerParams(
            dimension_semantics=("parallel", "parallel")),
    )(q, k, v)


def multi_headed_attention(params, query, key, value, num_heads,
                           compute_dtype=jnp.bfloat16):
    """Forward pass of MultiHeadedAttention.  Inputs: (B, d_model, N) NCL."""
    B, d_model, N = query.shape
    assert d_model % num_heads == 0
    dim = d_model // num_heads
    out_dtype = query.dtype
    cd = compute_dtype

    # One-time wrapper-side weight prep (outside the kernels):
    #  * permute channels so heads are contiguous (new c = h*dim + d instead of
    #    torch's interleaved c = d*H + h) -> no split/merge transposes needed;
    #  * fold the 1/sqrt(dim) attention scale into the q projection;
    #  * pre-transpose weights to (C, O) so kernels never transpose.
    c = jnp.arange(d_model)
    perm = (c % dim) * num_heads + (c // dim)   # old channel feeding new channel
    scale = 1.0 / math.sqrt(dim)

    wq_t = (params["wq"] * scale)[perm, :].T.astype(cd)
    wk_t = params["wk"][perm, :].T.astype(cd)
    wv_t = params["wv"][perm, :].T.astype(cd)
    wm_t = params["wm"][:, perm].T.astype(cd)
    bq = params["bq"][perm] * scale             # biases stay f32 (added to f32 acc)
    bk = params["bk"][perm]
    bv = params["bv"][perm]
    bm = params["bm"]

    # NCL -> channels-last rows: the only layout ops in the whole forward.
    def to_rows(x):
        return jnp.transpose(x, (0, 2, 1)).reshape(B * N, d_model).astype(cd)

    q = _linear(to_rows(query), wq_t, bq, cd).reshape(B, N, d_model)
    k = _linear(to_rows(key), wk_t, bk, cd).reshape(B, N, d_model)
    v = _linear(to_rows(value), wv_t, bv, cd).reshape(B, N, d_model)

    x = _attention(q, k, v, num_heads)                           # (B, N, d_model)
    y = _linear(x.reshape(B * N, d_model), wm_t, bm, out_dtype)  # merge conv
    return jnp.transpose(y.reshape(B, N, d_model), (0, 2, 1))    # back to NCL


# ---------------------------------------------------------------------------
# Pure-JAX reference (semantics of the PyTorch module)
# ---------------------------------------------------------------------------
def reference(params, query, key, value, num_heads):
    B, d_model, N = query.shape
    dim = d_model // num_heads

    def conv(x, w, b):
        return jnp.einsum("oc,bcn->bon", w, x) + b[None, :, None]

    q = conv(query, params["wq"], params["bq"]).reshape(B, dim, num_heads, N)
    k = conv(key, params["wk"], params["bk"]).reshape(B, dim, num_heads, N)
    v = conv(value, params["wv"], params["bv"]).reshape(B, dim, num_heads, N)
    scores = jnp.einsum("bdhn,bdhm->bhnm", q, k) / math.sqrt(dim)
    prob = jax.nn.softmax(scores, axis=-1)
    x = jnp.einsum("bhnm,bdhm->bdhn", prob, v)
    return conv(x.reshape(B, dim * num_heads, N), params["wm"], params["bm"])


# ---------------------------------------------------------------------------
if __name__ == "__main__":
    # d_model a multiple of 128 so projection/attention stores are lane-dense.
    B, d_model, num_heads, N = 2, 128, 4, 16

    keys = jax.random.split(jax.random.PRNGKey(0), 12)

    def w_init(k):
        return (jax.random.normal(k, (d_model, d_model), jnp.float32)
                / math.sqrt(d_model))

    def b_init(k):
        return jax.random.normal(k, (d_model,), jnp.float32) * 0.02

    params = {
        "wq": w_init(keys[0]), "bq": b_init(keys[1]),
        "wk": w_init(keys[2]), "bk": b_init(keys[3]),
        "wv": w_init(keys[4]), "bv": b_init(keys[5]),
        "wm": w_init(keys[6]), "bm": b_init(keys[7]),
    }

    query = jax.random.normal(keys[8], (B, d_model, N), jnp.float32)
    key_t = jax.random.normal(keys[9], (B, d_model, N), jnp.float32)
    value = jax.random.normal(keys[10], (B, d_model, N), jnp.float32)

    ref = reference(params, query, key_t, value, num_heads)

    # Strict numerical check: f32 MXU operands.
    out_f32 = jax.block_until_ready(
        multi_headed_attention(params, query, key_t, value, num_heads,
                               compute_dtype=jnp.float32))
    assert out_f32.shape == (B, d_model, N)
    assert jnp.max(jnp.abs(out_f32 - ref)) < 1e-3

    # Default perf path: bf16 MXU operands (v6e/v7x), f32 accumulation/softmax.
    out_bf16 = jax.block_until_ready(
        multi_headed_attention(params, query, key_t, value, num_heads))
    assert out_bf16.shape == (B, d_model, N)
    assert out_bf16.dtype == jnp.float32
    assert jnp.max(jnp.abs(out_bf16 - ref)) < 0.15   # bf16-operand tolerance

    print("KERNEL_OK")
</pallas_src>

<mosaic_0001>
module attributes {stable_mosaic.version = 11 : i64} {
  func.func @_linear_kernel(%arg0: i32, %arg1: memref<32x128xf32, #tpu.memory_space<vmem>>, %arg2: memref<128x128xf32, #tpu.memory_space<vmem>>, %arg3: memref<1x128xf32, #tpu.memory_space<vmem>>, %arg4: memref<32x128xf32, #tpu.memory_space<vmem>>) attributes {dimension_semantics = [#tpu.dimension_semantics<parallel>], iteration_bounds = array<i64: 1>, scalar_prefetch = 0 : i64, scratch_operands = 0 : i64, tpu.core_type = #tpu.core_type<tc>, window_params = [{transform_indices = @transform_0, window_bounds = array<i64: 32, 128>}, {pipeline_mode = #tpu.pipeline_mode<synchronous>, transform_indices = @transform_1, window_bounds = array<i64: 128, 128>}, {pipeline_mode = #tpu.pipeline_mode<synchronous>, transform_indices = @transform_2, window_bounds = array<i64: 1, 128>}, {transform_indices = @transform_3, window_bounds = array<i64: 32, 128>}]} {
    %c0 = arith.constant 0 : index
    %c0_0 = arith.constant 0 : index
    %0 = vector.load %arg1[%c0, %c0_0] : memref<32x128xf32, #tpu.memory_space<vmem>>, vector<32x128xf32>
    %c0_1 = arith.constant 0 : index
    %c0_2 = arith.constant 0 : index
    %1 = vector.load %arg2[%c0_1, %c0_2] : memref<128x128xf32, #tpu.memory_space<vmem>>, vector<128x128xf32>
    %cst = arith.constant dense<0.000000e+00> : vector<32x128xf32>
    %2 = tpu.matmul %0, %1, %cst {dimension_numbers = #tpu.dot_dimension_numbers<[1], [0], [0], [1], [0, 0, 1, 1], [], []>} : vector<32x128xf32>, vector<128x128xf32>, vector<32x128xf32> -> vector<32x128xf32>
    %c0_3 = arith.constant 0 : index
    %c0_4 = arith.constant 0 : index
    %3 = vector.load %arg3[%c0_3, %c0_4] : memref<1x128xf32, #tpu.memory_space<vmem>>, vector<1x128xf32>
    %4 = vector.broadcast %3 : vector<1x128xf32> to vector<32x128xf32>
    %5 = arith.addf %2, %4 : vector<32x128xf32>
    %c0_5 = arith.constant 0 : index
    %c0_6 = arith.constant 0 : index
    %6 = vector.load %arg4[%c0_5, %c0_6] : memref<32x128xf32, #tpu.memory_space<vmem>>, vector<32x128xf32>
    tpu.vector_store %arg4[%c0_5, %c0_6], %5 {strides = array<i32>} : memref<32x128xf32, #tpu.memory_space<vmem>>, vector<32x128xf32>,
    return
  }
  func.func @transform_0(%arg0: i32) -> (i32, i32) {
    %c0_i32 = arith.constant 0 : i32
    %c0_i32_0 = arith.constant 0 : i32
    return %arg0, %c0_i32 : i32, i32
  }
  func.func @transform_1(%arg0: i32) -> (i32, i32) {
    %c0_i32 = arith.constant 0 : i32
    %c0_i32_0 = arith.constant 0 : i32
    %c0_i32_1 = arith.constant 0 : i32
    return %c0_i32, %c0_i32_0 : i32, i32
  }
  func.func @transform_2(%arg0: i32) -> (i32, i32) {
    %c0_i32 = arith.constant 0 : i32
    %c0_i32_0 = arith.constant 0 : i32
    %c0_i32_1 = arith.constant 0 : i32
    return %c0_i32, %c0_i32_0 : i32, i32
  }
  func.func @transform_3(%arg0: i32) -> (i32, i32) {
    %c0_i32 = arith.constant 0 : i32
    %c0_i32_0 = arith.constant 0 : i32
    return %arg0, %c0_i32 : i32, i32
  }
}

</mosaic_0001>

<llo_original>
// kernel: tpu_custom_call.1
$region0: #{tpu_custom_call.1}
  #allocation0 [shape = 'u32[]', space=smem, size = 0x4, offset = 0x4, fixed_abs, tag = 'smem constant byte address 0x4 - core index']
  #allocation1 [shape = 'u32[72,128]{1,0:T(1,128)}', space=vmem, size = 0x9000, scoped, tag = 'internal scratch']
  %s0 = inlined_call_operand.hbm [shape: f32[32,128], index: 0, kind: input, shape index: {}]
  %s1 = inlined_call_operand.hbm [shape: f32[128,128], index: 1, kind: input, shape index: {}]
  %s2 = inlined_call_operand.vmem [shape: f32[1,128], index: 2, kind: input, shape index: {}]
  %s3 = inlined_call_operand.hbm [shape: f32[32,128], index: 3, kind: output, shape index: {}]
  %s4 = sld [smem:[#allocation0]]
  $region30: #{tpu_custom_call.1} parent=0
    _
  %s6 = ssub.s32 1, %s4
  %s7 = scalar_select 0, %s6, %s4
  $region1: #{tpu_custom_call.1} parent=0
    #allocation2 [shape = 'u8[16384]{0}', space=vmem, size = 0x4000, scoped, tag = 'input window, operand 0, single buffered']
    #allocation3 [shape = 's32[1]{0}', space=sflag, size = 0x4, scoped, tag = 'scoped memory for tpu_custom_call.1']
    #allocation4 [shape = 's32[1]{0}', space=sflag, size = 0x4, scoped, tag = 'scoped memory for tpu_custom_call.1']
    #allocation5 [shape = 'u8[65536]{0}', space=vmem, size = 0x10000, scoped, tag = 'input window, operand 1, single buffered']
    #allocation6 [shape = 's32[1]{0}', space=sflag, size = 0x4, scoped, tag = 'scoped memory for tpu_custom_call.1']
    #allocation7 [shape = 'u8[16384]{0}', space=vmem, size = 0x4000, scoped, tag = 'output window, operand 0, single buffered']
    %8 = vsyncpa [#allocation3], 0
    %9 = vsyncpa [#allocation6], 0
    %10 = vsyncpa [#allocation4], 0
    // Predicated region
    $region2: #{tpu_custom_call.1} parent=1 // pred_check
      _
    $region3: #{tpu_custom_call.1} parent=1 // pred_check_branch
      %12 = sbr.rel (0) target = $region5
    $region4: #{tpu_custom_call.1} parent=1 // pred_region
      %14 = vsyncadd [#allocation3], 0
      %s15 = sshll.u32 %s0, 4
      %s16 = int_to_ptr.hbm [resolvable:$true] %s15
      %s17 = sshll.u32 [#allocation2], 4
      %s18 = int_to_ptr.vmem [resolvable:$true] %s17
      %23 = dma.hbm_to_vmem [thread:$0]  %s16, 512, %s18, [#allocation3], 128, 128, 8
    $region5: #{tpu_custom_call.1} parent=1 // pred_fallthru
      _
    // Predicated region
    $region6: #{tpu_custom_call.1} parent=1 // pred_check
      _
    $region7: #{tpu_custom_call.1} parent=1 // pred_check_branch
      %25 = sbr.rel (0) target = $region9
    $region8: #{tpu_custom_call.1} parent=1 // pred_region
      %27 = vsyncadd [#allocation6], 0
      %s28 = sshll.u32 %s1, 4
      %s29 = int_to_ptr.hbm [resolvable:$true] %s28
      %s30 = sshll.u32 [#allocation5], 4
      %s31 = int_to_ptr.vmem [resolvable:$true] %s30
      %36 = dma.hbm_to_vmem [thread:$0]  %s29, 2048, %s31, [#allocation6], 128, 128, 8
    $region9: #{tpu_custom_call.1} parent=1 // pred_fallthru
      _
    // Predicated region
    $region10: #{tpu_custom_call.1} parent=1 // pred_check
      _
    $region11: #{tpu_custom_call.1} parent=1 // pred_check_branch
      %38 = sbr.rel (0) target = $region13
    $region12: #{tpu_custom_call.1} parent=1 // pred_region
      _
    $region13: #{tpu_custom_call.1} parent=1 // pred_fallthru
      _
    // Predicated region
    $region14: #{tpu_custom_call.1} parent=1 // pred_check
      _
    $region15: #{tpu_custom_call.1} parent=1 // pred_check_branch
      %40 = sbr.rel (0) target = $region17
    $region16: #{tpu_custom_call.1} parent=1 // pred_region
      %42 = dma.done [#allocation3], 512
    $region17: #{tpu_custom_call.1} parent=1 // pred_fallthru
      _
    // Predicated region
    $region18: #{tpu_custom_call.1} parent=1 // pred_check
      _
    $region19: #{tpu_custom_call.1} parent=1 // pred_check_branch
      %44 = sbr.rel (0) target = $region21
    $region20: #{tpu_custom_call.1} parent=1 // pred_region
      %46 = dma.done [#allocation6], 2048
    $region21: #{tpu_custom_call.1} parent=1 // pred_fallthru
      _
    %v47 = vld [vmem:[#allocation2] sm:$0xff]
    %v48 = vld [vmem:[#allocation2 + $0x8] sm:$0xff]
    %v49 = vld [vmem:[#allocation2 + $0x10] sm:$0xff]
    %v50 = vld [vmem:[#allocation2 + $0x18] sm:$0xff]
    %v51 = vld [vmem:[#allocation5] sm:$0xff]
    %v52 = vld [vmem:[#allocation5 + $0x8] sm:$0xff]
    %v53 = vld [vmem:[#allocation5 + $0x10] sm:$0xff]
    %v54 = vld [vmem:[#allocation5 + $0x18] sm:$0xff]
    %v55 = vld [vmem:[#allocation5 + $0x20] sm:$0xff]
    %v56 = vld [vmem:[#allocation5 + $0x28] sm:$0xff]
    %v57 = vld [vmem:[#allocation5 + $0x30] sm:$0xff]
    %v58 = vld [vmem:[#allocation5 + $0x38] sm:$0xff]
    %v59 = vld [vmem:[#allocation5 + $0x40] sm:$0xff]
    %v60 = vld [vmem:[#allocation5 + $0x48] sm:$0xff]
    %v61 = vld [vmem:[#allocation5 + $0x50] sm:$0xff]
    %v62 = vld [vmem:[#allocation5 + $0x58] sm:$0xff]
    %v63 = vld [vmem:[#allocation5 + $0x60] sm:$0xff]
    %v64 = vld [vmem:[#allocation5 + $0x68] sm:$0xff]
    %v65 = vld [vmem:[#allocation5 + $0x70] sm:$0xff]
    %v66 = vld [vmem:[#allocation5 + $0x78] sm:$0xff]
    %v67 = vld [vmem:[%s2] sm:$0x1]
    %v69 = vperm.slane %v67, 0
    %71 = vmatpush.msra.mxu0 %v66
    %72 = vmatpush.msra.mxu0 %v65
    %73 = vmatpush.msra.mxu0 %v64
    %74 = vmatpush.msra.mxu0 %v63
    %75 = vmatpush.msra.mxu0 %v62
    %76 = vmatpush.msra.mxu0 %v61
    %77 = vmatpush.msra.mxu0 %v60
    %78 = vmatpush.msra.mxu0 %v59
    %79 = vmatpush.msra.mxu0 %v58
    %80 = vmatpush.msra.mxu0 %v57
    %81 = vmatpush.msra.mxu0 %v56
    %82 = vmatpush.msra.mxu0 %v55
    %83 = vmatpush.msra.mxu0 %v54
    %84 = vmatpush.msra.mxu0 %v53
    %85 = vmatpush.msra.mxu0 %v52
    %86 = vmatpush.msra.mxu0 %v51
    %87 = vmatmul.f32.gmra.mxu0 %v47
    %v88 = vpop.f32.mrf.mxu0
    %v89 = vadd.f32 %v69, %v88
    %90 = vmatmul.f32.gmra.mxu0 %v48
    %v91 = vpop.f32.mrf.mxu0
    %v92 = vadd.f32 %v69, %v91
    %93 = vmatmul.f32.gmra.mxu0 %v49
    %v94 = vpop.f32.mrf.mxu0
    %v95 = vadd.f32 %v69, %v94
    %96 = vmatmul.f32.gmra.mxu0 %v50
    %v97 = vpop.f32.mrf.mxu0
    %v98 = vadd.f32 %v69, %v97
    %99 = vdwg.mxu0
    %100 = vst [vmem:[#allocation7] sm:$0xff] %v89
    %101 = vst [vmem:[#allocation7 + $0x8] sm:$0xff] %v92
    %102 = vst [vmem:[#allocation7 + $0x10] sm:$0xff] %v95
    %103 = vst [vmem:[#allocation7 + $0x18] sm:$0xff] %v98
    // Predicated region
    $region22: #{tpu_custom_call.1} parent=1 // pred_check
      _
    $region23: #{tpu_custom_call.1} parent=1 // pred_check_branch
      %105 = sbr.rel (0) target = $region25
    $region24: #{tpu_custom_call.1} parent=1 // pred_region
      %107 = vsyncadd [#allocation4], 0
      %s108 = sshll.u32 [#allocation7], 4
      %s109 = int_to_ptr.vmem [resolvable:$true] %s108
      %s110 = sshll.u32 %s3, 4
      %s111 = int_to_ptr.hbm [resolvable:$true] %s110
      %116 = dma.vmem_to_hbm [thread:$0]  %s109, 512, %s111, [#allocation4], 128, 128, 8
    $region25: #{tpu_custom_call.1} parent=1 // pred_fallthru
      _
    // Predicated region
    $region26: #{tpu_custom_call.1} parent=1 // pred_check
      _
    $region27: #{tpu_custom_call.1} parent=1 // pred_check_branch
      %118 = sbr.rel (0) target = $region29
    $region28: #{tpu_custom_call.1} parent=1 // pred_region
      %120 = dma.done [#allocation4], 512
    $region29: #{tpu_custom_call.1} parent=1 // pred_fallthru
      _
    %121 = vsyncpa [#allocation3], 1
    %122 = vsyncpa [#allocation6], 1
    %123 = vsyncpa [#allocation4], 1

</llo_original>
